<compile_context>
chip_gen: v7x
topology: tpu7x:2x2x1
jax: 0.10.0
libtpu: 0.0.40
codegen_flags: <defaults>
</compile_context>

<pallas_src>
import functools

import jax
import jax.numpy as jnp
import numpy as np
from jax.experimental import pallas as pl
from jax.experimental.pallas import tpu as pltpu


# ----------------------------- host-side constant builders (run ONCE) -------------------

def _conv_slab_pooledw(w, b, w_in, w_out, pad=128):
    """Build the ky-folded, pool-W-reordered conv slab.

    Returns:
      w_cat: (5*w_in*ic, 2*pad) -- rows = ky*w_in*ic + r*ic + ic_idx,
             cols [0, half*oc) = even output columns (ow = 0,2,...),
             cols [pad, pad+half*oc) = odd output columns (ow = 1,3,...), zero padded.
      b_cat: (1, 2*pad) matching per-column bias.
    """
    oc, ic, kh, kw = w.shape
    t = np.zeros((kw, w_in, w_out), np.float32)          # t[kx, r, ow] = 1 iff r == ow + kx
    for kx in range(kw):
        for ow in range(w_out):
            t[kx, ow + kx, ow] = 1.0
    wk = w.transpose(2, 3, 1, 0)                         # (ky, kx, ic, oc)
    slab = np.einsum("xrw,kxio->kriwo", t, wk)           # (ky, w_in, ic, w_out, oc)

    half = w_out // 2
    ev = slab[:, :, :, 0::2, :].reshape(kh, w_in * ic, half * oc)
    od = slab[:, :, :, 1::2, :].reshape(kh, w_in * ic, half * oc)

    def padded(a):
        out = np.zeros((kh, w_in * ic, pad), np.float32)
        out[:, :, : half * oc] = a
        return out

    w_cat = np.concatenate([padded(ev), padded(od)], axis=-1).reshape(kh * w_in * ic, 2 * pad)

    b_half = np.zeros((pad,), np.float32)
    b_half[: half * oc] = np.tile(b, half)
    b_cat = np.concatenate([b_half, b_half]).reshape(1, 2 * pad)
    return w_cat, b_cat


def prepare_inputs(params):
    """One-time weight re-layout (pure numpy on host -- NOT in the per-call jit path)."""
    p = {k: np.asarray(v, np.float32) for k, v in params.items()}

    w1, b1 = _conv_slab_pooledw(p["conv1_w"], p["conv1_b"], w_in=28, w_out=24)  # (140,256)
    w2, b2 = _conv_slab_pooledw(p["conv2_w"], p["conv2_b"], w_in=12, w_out=8)   # (360,256)

    # fc1: PyTorch flatten order is (c, h, w); kernel LHS lane order is h*48 + w*12 + c.
    wf1 = p["fc1_w"].reshape(120, 12, 4, 4).transpose(2, 3, 1, 0).reshape(192, 120)
    bf1 = p["fc1_b"].reshape(1, 120)
    wf2 = p["fc2_w"].T                                                          # (120, 60)
    bf2 = p["fc2_b"].reshape(1, 60)
    wf3 = p["out_w"].T                                                          # (60, 10)
    bf3 = p["out_b"].reshape(1, 10)

    bf16 = jnp.bfloat16
    return dict(
        w1=jnp.asarray(w1, bf16), b1=jnp.asarray(b1, jnp.float32),
        w2=jnp.asarray(w2, bf16), b2=jnp.asarray(b2, jnp.float32),
        wf1=jnp.asarray(wf1, bf16), bf1=jnp.asarray(bf1, jnp.float32),
        wf2=jnp.asarray(wf2, bf16), bf2=jnp.asarray(bf2, jnp.float32),
        wf3=jnp.asarray(wf3, bf16), bf3=jnp.asarray(bf3, jnp.float32),
    )


# ----------------------------------- fused kernel ---------------------------------------

def _fused_kernel(n, x_ref, w1_ref, b1_ref, w2_ref, b2_ref,
                  wf1_ref, bf1_ref, wf2_ref, bf2_ref, wf3_ref, bf3_ref,
                  o_ref, s1_ref, s2_ref, s3_ref, s4_ref):
    f32 = jnp.float32
    bf16 = jnp.bfloat16

    # ---------- conv1 + relu + pool-W (one matmul) ----------
    # X5[i*24+oh, ky*28 + r] = x[i, oh+ky, r]
    per_img = []
    for i in range(n):
        base = i * 28
        rows = [x_ref[base + ky: base + ky + 24, :] for ky in range(5)]
        per_img.append(jnp.concatenate(rows, axis=1))                    # (24, 140)
    x5 = per_img[0] if n == 1 else jnp.concatenate(per_img, axis=0)      # (n*24, 140)
    y1 = jnp.dot(x5.astype(bf16), w1_ref[...], preferred_element_type=f32)  # (n*24, 256)
    y1 = jnp.maximum(y1 + b1_ref[...], 0.0)
    # even-ow half = lanes [0,72), odd-ow half = lanes [128,200)  ->  pool over width
    s1_ref[...] = jnp.maximum(y1[:, :72], y1[:, 128:200])                # (n*24, 72)

    # ---------- pool-H 1 (stride-2 sublane ref reads) ----------
    s2_ref[...] = jnp.maximum(s1_ref[pl.ds(0, n * 12, stride=2), :],
                              s1_ref[pl.ds(1, n * 12, stride=2), :])     # (n*12, 72)

    # ---------- conv2 + relu + pool-W (one matmul) ----------
    per_img = []
    for i in range(n):
        base = i * 12
        rows = [s2_ref[base + ky: base + ky + 8, :] for ky in range(5)]
        per_img.append(jnp.concatenate(rows, axis=1))                    # (8, 360)
    x5b = per_img[0] if n == 1 else jnp.concatenate(per_img, axis=0)     # (n*8, 360)
    y2 = jnp.dot(x5b.astype(bf16), w2_ref[...], preferred_element_type=f32)  # (n*8, 256)
    y2 = jnp.maximum(y2 + b2_ref[...], 0.0)
    s3_ref[...] = jnp.maximum(y2[:, :48], y2[:, 128:176])                # (n*8, 48)

    # ---------- pool-H 2 ----------
    s4_ref[...] = jnp.maximum(s3_ref[pl.ds(0, n * 4, stride=2), :],
                              s3_ref[pl.ds(1, n * 4, stride=2), :])      # (n*4, 48)

    # ---------- flatten (folded into wf1) + fc1 + fc2 + out (3 matmuls) ----------
    lhs = jnp.concatenate(
        [s4_ref[pl.ds(h, n, stride=4), :] for h in range(4)], axis=1)    # (n, 192)
    f1 = jnp.maximum(jnp.dot(lhs.astype(bf16), wf1_ref[...],
                             preferred_element_type=f32) + bf1_ref[...], 0.0)   # (n, 120)
    f2 = jnp.maximum(jnp.dot(f1.astype(bf16), wf2_ref[...],
                             preferred_element_type=f32) + bf2_ref[...], 0.0)   # (n, 60)
    o_ref[...] = (jnp.dot(f2.astype(bf16), wf3_ref[...],
                          preferred_element_type=f32) + bf3_ref[...]).astype(o_ref.dtype)


# ----------------------------------- wrapper --------------------------------------------

def _full_block(shape):
    zeros = (0,) * len(shape)
    return pl.BlockSpec(tuple(shape), lambda: zeros)


def _flops(n):
    d = lambda m, k, nn: 2 * m * k * nn
    return int(d(n * 24, 140, 256) + d(n * 8, 360, 256)
               + d(n, 192, 120) + d(n, 120, 60) + d(n, 60, 10))


def fused_forward(prep, x):
    n = x.shape[0]
    assert x.shape[1:] == (1, 28, 28), x.shape
    x2d = x.reshape(n * 28, 28)

    order = ("w1", "b1", "w2", "b2", "wf1", "bf1", "wf2", "bf2", "wf3", "bf3")
    ins = [x2d] + [prep[k] for k in order]
    in_specs = [_full_block(a.shape) for a in ins]
    bytes_accessed = int(sum(a.size * a.dtype.itemsize for a in ins)) + n * 10 * 4

    scratch = [
        pltpu.VMEM((n * 24, 72), jnp.float32),   # conv1 relu, W-pooled
        pltpu.VMEM((n * 12, 72), jnp.float32),   # pool1 output (conv2 input)
        pltpu.VMEM((n * 8, 48), jnp.float32),    # conv2 relu, W-pooled
        pltpu.VMEM((n * 4, 48), jnp.float32),    # pool2 output (fc1 input)
    ]

    return pl.pallas_call(
        functools.partial(_fused_kernel, n),
        out_shape=jax.ShapeDtypeStruct((n, 10), jnp.float32),
        in_specs=in_specs,
        out_specs=_full_block((n, 10)),
        scratch_shapes=scratch,
        cost_estimate=pl.CostEstimate(flops=_flops(n), transcendentals=0,
                                      bytes_accessed=bytes_accessed),
    )(*ins)


network_forward = jax.jit(fused_forward)


# ------------------------------ params + pure-JAX reference -----------------------------

def init_params(key):
    ks = jax.random.split(key, 10)

    def u(k, shape, fan_in):
        bound = 1.0 / np.sqrt(fan_in)
        return jax.random.uniform(k, shape, jnp.float32, -bound, bound)

    return {
        "conv1_w": u(ks[0], (6, 1, 5, 5), 1 * 5 * 5),
        "conv1_b": u(ks[1], (6,), 1 * 5 * 5),
        "conv2_w": u(ks[2], (12, 6, 5, 5), 6 * 5 * 5),
        "conv2_b": u(ks[3], (12,), 6 * 5 * 5),
        "fc1_w": u(ks[4], (120, 192), 192),
        "fc1_b": u(ks[5], (120,), 192),
        "fc2_w": u(ks[6], (60, 120), 120),
        "fc2_b": u(ks[7], (60,), 120),
        "out_w": u(ks[8], (10, 60), 60),
        "out_b": u(ks[9], (10,), 60),
    }


def network_forward_ref(params, t):
    """Pure-JAX (f32) reference for validation."""
    def conv(x, w, b):
        y = jax.lax.conv_general_dilated(
            x, w, window_strides=(1, 1), padding="VALID",
            dimension_numbers=("NCHW", "OIHW", "NCHW"))
        return jax.nn.relu(y + b[None, :, None, None])

    def pool(x):
        nn_, c, h, w = x.shape
        return x.reshape(nn_, c, h // 2, 2, w // 2, 2).max(axis=(3, 5))

    t = pool(conv(t, params["conv1_w"], params["conv1_b"]))
    t = pool(conv(t, params["conv2_w"], params["conv2_b"]))
    t = t.reshape(-1, 12 * 4 * 4)
    t = jax.nn.relu(t @ params["fc1_w"].T + params["fc1_b"])
    t = jax.nn.relu(t @ params["fc2_w"].T + params["fc2_b"])
    return t @ params["out_w"].T + params["out_b"]


if __name__ == "__main__":
    key = jax.random.PRNGKey(0)
    pkey, xkey = jax.random.split(key)
    params = init_params(pkey)
    # MNIST-like input implied by fc1 (12*4*4): (N=2, C=1, 28, 28)
    x = jax.random.normal(xkey, (2, 1, 28, 28), jnp.float32)

    # One-time host-side weight re-layout (hoisted out of the per-call jit path).
    prep = prepare_inputs(jax.device_get(params))

    out = jax.block_until_ready(network_forward(prep, x))
    ref = jax.block_until_ready(network_forward_ref(params, x))

    assert out.shape == (2, 10), out.shape
    max_diff = float(np.max(np.abs(np.asarray(out) - np.asarray(ref))))
    # bf16 matmul inputs (f32 accumulation): expect ~1e-3-level deviations here.
    assert np.allclose(np.asarray(out), np.asarray(ref), rtol=2e-2, atol=2e-2), (
        "mismatch vs reference, max abs diff = %g" % max_diff)
    print("KERNEL_OK")
</pallas_src>

<mosaic_0001>
module attributes {stable_mosaic.version = 11 : i64} {
  func.func @_fused_kernel(%arg0: memref<56x28xf32, #tpu.memory_space<vmem>>, %arg1: memref<140x256xbf16, #tpu.memory_space<vmem>>, %arg2: memref<1x256xf32, #tpu.memory_space<vmem>>, %arg3: memref<360x256xbf16, #tpu.memory_space<vmem>>, %arg4: memref<1x256xf32, #tpu.memory_space<vmem>>, %arg5: memref<192x120xbf16, #tpu.memory_space<vmem>>, %arg6: memref<1x120xf32, #tpu.memory_space<vmem>>, %arg7: memref<120x60xbf16, #tpu.memory_space<vmem>>, %arg8: memref<1x60xf32, #tpu.memory_space<vmem>>, %arg9: memref<60x10xbf16, #tpu.memory_space<vmem>>, %arg10: memref<1x10xf32, #tpu.memory_space<vmem>>, %arg11: memref<2x10xf32, #tpu.memory_space<vmem>>, %arg12: memref<48x72xf32, #tpu.memory_space<vmem>>, %arg13: memref<24x72xf32, #tpu.memory_space<vmem>>, %arg14: memref<16x48xf32, #tpu.memory_space<vmem>>, %arg15: memref<8x48xf32, #tpu.memory_space<vmem>>) attributes {dimension_semantics = [], scalar_prefetch = 0 : i64, scratch_operands = 4 : i64, tpu.core_type = #tpu.core_type<tc>} {
    %c0 = arith.constant 0 : index
    %c0_0 = arith.constant 0 : index
    %0 = vector.load %arg0[%c0, %c0_0] : memref<56x28xf32, #tpu.memory_space<vmem>>, vector<24x28xf32>
    %c1 = arith.constant 1 : index
    %c0_1 = arith.constant 0 : index
    %1 = vector.load %arg0[%c1, %c0_1] : memref<56x28xf32, #tpu.memory_space<vmem>>, vector<24x28xf32>
    %c2 = arith.constant 2 : index
    %c0_2 = arith.constant 0 : index
    %2 = vector.load %arg0[%c2, %c0_2] : memref<56x28xf32, #tpu.memory_space<vmem>>, vector<24x28xf32>
    %c3 = arith.constant 3 : index
    %c0_3 = arith.constant 0 : index
    %3 = vector.load %arg0[%c3, %c0_3] : memref<56x28xf32, #tpu.memory_space<vmem>>, vector<24x28xf32>
    %c4 = arith.constant 4 : index
    %c0_4 = arith.constant 0 : index
    %4 = vector.load %arg0[%c4, %c0_4] : memref<56x28xf32, #tpu.memory_space<vmem>>, vector<24x28xf32>
    %5 = tpu.concatenate %0, %1, %2, %3, %4 in 1 : vector<24x28xf32>, vector<24x28xf32>, vector<24x28xf32>, vector<24x28xf32>, vector<24x28xf32> -> vector<24x140xf32>
    %c28 = arith.constant 28 : index
    %c0_5 = arith.constant 0 : index
    %6 = vector.load %arg0[%c28, %c0_5] : memref<56x28xf32, #tpu.memory_space<vmem>>, vector<24x28xf32>
    %c29 = arith.constant 29 : index
    %c0_6 = arith.constant 0 : index
    %7 = vector.load %arg0[%c29, %c0_6] : memref<56x28xf32, #tpu.memory_space<vmem>>, vector<24x28xf32>
    %c30 = arith.constant 30 : index
    %c0_7 = arith.constant 0 : index
    %8 = vector.load %arg0[%c30, %c0_7] : memref<56x28xf32, #tpu.memory_space<vmem>>, vector<24x28xf32>
    %c31 = arith.constant 31 : index
    %c0_8 = arith.constant 0 : index
    %9 = vector.load %arg0[%c31, %c0_8] : memref<56x28xf32, #tpu.memory_space<vmem>>, vector<24x28xf32>
    %c32 = arith.constant 32 : index
    %c0_9 = arith.constant 0 : index
    %10 = vector.load %arg0[%c32, %c0_9] : memref<56x28xf32, #tpu.memory_space<vmem>>, vector<24x28xf32>
    %11 = tpu.concatenate %6, %7, %8, %9, %10 in 1 : vector<24x28xf32>, vector<24x28xf32>, vector<24x28xf32>, vector<24x28xf32>, vector<24x28xf32> -> vector<24x140xf32>
    %12 = tpu.concatenate %5, %11 in 0 : vector<24x140xf32>, vector<24x140xf32> -> vector<48x140xf32>
    %13 = arith.truncf %12 : vector<48x140xf32> to vector<48x140xbf16>
    %c0_10 = arith.constant 0 : index
    %c0_11 = arith.constant 0 : index
    %14 = vector.load %arg1[%c0_10, %c0_11] : memref<140x256xbf16, #tpu.memory_space<vmem>>, vector<140x256xbf16>
    %cst = arith.constant dense<0.000000e+00> : vector<48x256xf32>
    %15 = tpu.matmul %13, %14, %cst {dimension_numbers = #tpu.dot_dimension_numbers<[1], [0], [0], [1], [0, 0, 1, 1], [], []>} : vector<48x140xbf16>, vector<140x256xbf16>, vector<48x256xf32> -> vector<48x256xf32>
    %c0_12 = arith.constant 0 : index
    %c0_13 = arith.constant 0 : index
    %16 = vector.load %arg2[%c0_12, %c0_13] : memref<1x256xf32, #tpu.memory_space<vmem>>, vector<1x256xf32>
    %17 = vector.broadcast %16 : vector<1x256xf32> to vector<48x256xf32>
    %18 = arith.addf %15, %17 : vector<48x256xf32>
    %cst_14 = arith.constant 0.000000e+00 : f32
    %19 = vector.broadcast %cst_14 : f32 to vector<48x256xf32>
    %20 = arith.maximumf %18, %19 : vector<48x256xf32>
    %21 = vector.extract_strided_slice %20 {offsets = [0, 0], sizes = [48, 72], strides = [1, 1]} : vector<48x256xf32> to vector<48x72xf32>
    %22 = vector.extract_strided_slice %20 {offsets = [0, 128], sizes = [48, 72], strides = [1, 1]} : vector<48x256xf32> to vector<48x72xf32>
    %23 = arith.maximumf %21, %22 : vector<48x72xf32>
    %c0_15 = arith.constant 0 : index
    %c0_16 = arith.constant 0 : index
    %24 = vector.load %arg12[%c0_15, %c0_16] : memref<48x72xf32, #tpu.memory_space<vmem>>, vector<48x72xf32>
    tpu.vector_store %arg12[%c0_15, %c0_16], %23 {strides = array<i32>} : memref<48x72xf32, #tpu.memory_space<vmem>>, vector<48x72xf32>,
    %c0_17 = arith.constant 0 : index
    %c0_18 = arith.constant 0 : index
    %25 = tpu.strided_load %arg12[%c0_17, %c0_18] {strides = array<i32: 2, 1>} : memref<48x72xf32, #tpu.memory_space<vmem>>, vector<24x72xf32>
    %c1_19 = arith.constant 1 : index
    %c0_20 = arith.constant 0 : index
    %26 = tpu.strided_load %arg12[%c1_19, %c0_20] {strides = array<i32: 2, 1>} : memref<48x72xf32, #tpu.memory_space<vmem>>, vector<24x72xf32>
    %27 = arith.maximumf %25, %26 : vector<24x72xf32>
    %c0_21 = arith.constant 0 : index
    %c0_22 = arith.constant 0 : index
    %28 = vector.load %arg13[%c0_21, %c0_22] : memref<24x72xf32, #tpu.memory_space<vmem>>, vector<24x72xf32>
    tpu.vector_store %arg13[%c0_21, %c0_22], %27 {strides = array<i32>} : memref<24x72xf32, #tpu.memory_space<vmem>>, vector<24x72xf32>,
    %c0_23 = arith.constant 0 : index
    %c0_24 = arith.constant 0 : index
    %29 = vector.load %arg13[%c0_23, %c0_24] : memref<24x72xf32, #tpu.memory_space<vmem>>, vector<8x72xf32>
    %c1_25 = arith.constant 1 : index
    %c0_26 = arith.constant 0 : index
    %30 = vector.load %arg13[%c1_25, %c0_26] : memref<24x72xf32, #tpu.memory_space<vmem>>, vector<8x72xf32>
    %c2_27 = arith.constant 2 : index
    %c0_28 = arith.constant 0 : index
    %31 = vector.load %arg13[%c2_27, %c0_28] : memref<24x72xf32, #tpu.memory_space<vmem>>, vector<8x72xf32>
    %c3_29 = arith.constant 3 : index
    %c0_30 = arith.constant 0 : index
    %32 = vector.load %arg13[%c3_29, %c0_30] : memref<24x72xf32, #tpu.memory_space<vmem>>, vector<8x72xf32>
    %c4_31 = arith.constant 4 : index
    %c0_32 = arith.constant 0 : index
    %33 = vector.load %arg13[%c4_31, %c0_32] : memref<24x72xf32, #tpu.memory_space<vmem>>, vector<8x72xf32>
    %34 = tpu.concatenate %29, %30, %31, %32, %33 in 1 : vector<8x72xf32>, vector<8x72xf32>, vector<8x72xf32>, vector<8x72xf32>, vector<8x72xf32> -> vector<8x360xf32>
    %c12 = arith.constant 12 : index
    %c0_33 = arith.constant 0 : index
    %35 = vector.load %arg13[%c12, %c0_33] : memref<24x72xf32, #tpu.memory_space<vmem>>, vector<8x72xf32>
    %c13 = arith.constant 13 : index
    %c0_34 = arith.constant 0 : index
    %36 = vector.load %arg13[%c13, %c0_34] : memref<24x72xf32, #tpu.memory_space<vmem>>, vector<8x72xf32>
    %c14 = arith.constant 14 : index
    %c0_35 = arith.constant 0 : index
    %37 = vector.load %arg13[%c14, %c0_35] : memref<24x72xf32, #tpu.memory_space<vmem>>, vector<8x72xf32>
    %c15 = arith.constant 15 : index
    %c0_36 = arith.constant 0 : index
    %38 = vector.load %arg13[%c15, %c0_36] : memref<24x72xf32, #tpu.memory_space<vmem>>, vector<8x72xf32>
    %c16 = arith.constant 16 : index
    %c0_37 = arith.constant 0 : index
    %39 = vector.load %arg13[%c16, %c0_37] : memref<24x72xf32, #tpu.memory_space<vmem>>, vector<8x72xf32>
    %40 = tpu.concatenate %35, %36, %37, %38, %39 in 1 : vector<8x72xf32>, vector<8x72xf32>, vector<8x72xf32>, vector<8x72xf32>, vector<8x72xf32> -> vector<8x360xf32>
    %41 = tpu.concatenate %34, %40 in 0 : vector<8x360xf32>, vector<8x360xf32> -> vector<16x360xf32>
    %42 = arith.truncf %41 : vector<16x360xf32> to vector<16x360xbf16>
    %c0_38 = arith.constant 0 : index
    %c0_39 = arith.constant 0 : index
    %43 = vector.load %arg3[%c0_38, %c0_39] : memref<360x256xbf16, #tpu.memory_space<vmem>>, vector<360x256xbf16>
    %cst_40 = arith.constant dense<0.000000e+00> : vector<16x256xf32>
    %44 = tpu.matmul %42, %43, %cst_40 {dimension_numbers = #tpu.dot_dimension_numbers<[1], [0], [0], [1], [0, 0, 1, 1], [], []>} : vector<16x360xbf16>, vector<360x256xbf16>, vector<16x256xf32> -> vector<16x256xf32>
    %c0_41 = arith.constant 0 : index
    %c0_42 = arith.constant 0 : index
    %45 = vector.load %arg4[%c0_41, %c0_42] : memref<1x256xf32, #tpu.memory_space<vmem>>, vector<1x256xf32>
    %46 = vector.broadcast %45 : vector<1x256xf32> to vector<16x256xf32>
    %47 = arith.addf %44, %46 : vector<16x256xf32>
    %cst_43 = arith.constant 0.000000e+00 : f32
    %48 = vector.broadcast %cst_43 : f32 to vector<16x256xf32>
    %49 = arith.maximumf %47, %48 : vector<16x256xf32>
    %50 = vector.extract_strided_slice %49 {offsets = [0, 0], sizes = [16, 48], strides = [1, 1]} : vector<16x256xf32> to vector<16x48xf32>
    %51 = vector.extract_strided_slice %49 {offsets = [0, 128], sizes = [16, 48], strides = [1, 1]} : vector<16x256xf32> to vector<16x48xf32>
    %52 = arith.maximumf %50, %51 : vector<16x48xf32>
    %c0_44 = arith.constant 0 : index
    %c0_45 = arith.constant 0 : index
    %53 = vector.load %arg14[%c0_44, %c0_45] : memref<16x48xf32, #tpu.memory_space<vmem>>, vector<16x48xf32>
    tpu.vector_store %arg14[%c0_44, %c0_45], %52 {strides = array<i32>} : memref<16x48xf32, #tpu.memory_space<vmem>>, vector<16x48xf32>,
    %c0_46 = arith.constant 0 : index
    %c0_47 = arith.constant 0 : index
    %54 = tpu.strided_load %arg14[%c0_46, %c0_47] {strides = array<i32: 2, 1>} : memref<16x48xf32, #tpu.memory_space<vmem>>, vector<8x48xf32>
    %c1_48 = arith.constant 1 : index
    %c0_49 = arith.constant 0 : index
    %55 = tpu.strided_load %arg14[%c1_48, %c0_49] {strides = array<i32: 2, 1>} : memref<16x48xf32, #tpu.memory_space<vmem>>, vector<8x48xf32>
    %56 = arith.maximumf %54, %55 : vector<8x48xf32>
    %c0_50 = arith.constant 0 : index
    %c0_51 = arith.constant 0 : index
    %57 = vector.load %arg15[%c0_50, %c0_51] : memref<8x48xf32, #tpu.memory_space<vmem>>, vector<8x48xf32>
    tpu.vector_store %arg15[%c0_50, %c0_51], %56 {strides = array<i32>} : memref<8x48xf32, #tpu.memory_space<vmem>>, vector<8x48xf32>,
    %c0_52 = arith.constant 0 : index
    %c0_53 = arith.constant 0 : index
    %58 = tpu.strided_load %arg15[%c0_52, %c0_53] {strides = array<i32: 4, 1>} : memref<8x48xf32, #tpu.memory_space<vmem>>, vector<2x48xf32>
    %c1_54 = arith.constant 1 : index
    %c0_55 = arith.constant 0 : index
    %59 = tpu.strided_load %arg15[%c1_54, %c0_55] {strides = array<i32: 4, 1>} : memref<8x48xf32, #tpu.memory_space<vmem>>, vector<2x48xf32>
    %c2_56 = arith.constant 2 : index
    %c0_57 = arith.constant 0 : index
    %60 = tpu.strided_load %arg15[%c2_56, %c0_57] {strides = array<i32: 4, 1>} : memref<8x48xf32, #tpu.memory_space<vmem>>, vector<2x48xf32>
    %c3_58 = arith.constant 3 : index
    %c0_59 = arith.constant 0 : index
    %61 = tpu.strided_load %arg15[%c3_58, %c0_59] {strides = array<i32: 4, 1>} : memref<8x48xf32, #tpu.memory_space<vmem>>, vector<2x48xf32>
    %62 = tpu.concatenate %58, %59, %60, %61 in 1 : vector<2x48xf32>, vector<2x48xf32>, vector<2x48xf32>, vector<2x48xf32> -> vector<2x192xf32>
    %63 = arith.truncf %62 : vector<2x192xf32> to vector<2x192xbf16>
    %c0_60 = arith.constant 0 : index
    %c0_61 = arith.constant 0 : index
    %64 = vector.load %arg5[%c0_60, %c0_61] : memref<192x120xbf16, #tpu.memory_space<vmem>>, vector<192x120xbf16>
    %cst_62 = arith.constant dense<0.000000e+00> : vector<2x120xf32>
    %65 = tpu.matmul %63, %64, %cst_62 {dimension_numbers = #tpu.dot_dimension_numbers<[1], [0], [0], [1], [0, 0, 1, 1], [], []>} : vector<2x192xbf16>, vector<192x120xbf16>, vector<2x120xf32> -> vector<2x120xf32>
    %c0_63 = arith.constant 0 : index
    %c0_64 = arith.constant 0 : index
    %66 = vector.load %arg6[%c0_63, %c0_64] : memref<1x120xf32, #tpu.memory_space<vmem>>, vector<1x120xf32>
    %67 = vector.broadcast %66 : vector<1x120xf32> to vector<2x120xf32>
    %68 = arith.addf %65, %67 : vector<2x120xf32>
    %cst_65 = arith.constant 0.000000e+00 : f32
    %69 = vector.broadcast %cst_65 : f32 to vector<2x120xf32>
    %70 = arith.maximumf %68, %69 : vector<2x120xf32>
    %71 = arith.truncf %70 : vector<2x120xf32> to vector<2x120xbf16>
    %c0_66 = arith.constant 0 : index
    %c0_67 = arith.constant 0 : index
    %72 = vector.load %arg7[%c0_66, %c0_67] : memref<120x60xbf16, #tpu.memory_space<vmem>>, vector<120x60xbf16>
    %cst_68 = arith.constant dense<0.000000e+00> : vector<2x60xf32>
    %73 = tpu.matmul %71, %72, %cst_68 {dimension_numbers = #tpu.dot_dimension_numbers<[1], [0], [0], [1], [0, 0, 1, 1], [], []>} : vector<2x120xbf16>, vector<120x60xbf16>, vector<2x60xf32> -> vector<2x60xf32>
    %c0_69 = arith.constant 0 : index
    %c0_70 = arith.constant 0 : index
    %74 = vector.load %arg8[%c0_69, %c0_70] : memref<1x60xf32, #tpu.memory_space<vmem>>, vector<1x60xf32>
    %75 = vector.broadcast %74 : vector<1x60xf32> to vector<2x60xf32>
    %76 = arith.addf %73, %75 : vector<2x60xf32>
    %cst_71 = arith.constant 0.000000e+00 : f32
    %77 = vector.broadcast %cst_71 : f32 to vector<2x60xf32>
    %78 = arith.maximumf %76, %77 : vector<2x60xf32>
    %79 = arith.truncf %78 : vector<2x60xf32> to vector<2x60xbf16>
    %c0_72 = arith.constant 0 : index
    %c0_73 = arith.constant 0 : index
    %80 = vector.load %arg9[%c0_72, %c0_73] : memref<60x10xbf16, #tpu.memory_space<vmem>>, vector<60x10xbf16>
    %cst_74 = arith.constant dense<0.000000e+00> : vector<2x10xf32>
    %81 = tpu.matmul %79, %80, %cst_74 {dimension_numbers = #tpu.dot_dimension_numbers<[1], [0], [0], [1], [0, 0, 1, 1], [], []>} : vector<2x60xbf16>, vector<60x10xbf16>, vector<2x10xf32> -> vector<2x10xf32>
    %c0_75 = arith.constant 0 : index
    %c0_76 = arith.constant 0 : index
    %82 = vector.load %arg10[%c0_75, %c0_76] : memref<1x10xf32, #tpu.memory_space<vmem>>, vector<1x10xf32>
    %83 = vector.broadcast %82 : vector<1x10xf32> to vector<2x10xf32>
    %84 = arith.addf %81, %83 : vector<2x10xf32>
    %c0_77 = arith.constant 0 : index
    %c0_78 = arith.constant 0 : index
    %85 = vector.load %arg11[%c0_77, %c0_78] : memref<2x10xf32, #tpu.memory_space<vmem>>, vector<2x10xf32>
    tpu.vector_store %arg11[%c0_77, %c0_78], %84 {strides = array<i32>} : memref<2x10xf32, #tpu.memory_space<vmem>>, vector<2x10xf32>,
    return
  }
}

</mosaic_0001>

<llo_original>
// kernel: fused_forward.1
$region0: #{fused_forward.1}
  #allocation0 [shape = 'u32[]', space=smem, size = 0x4, offset = 0x4, fixed_abs, tag = 'smem constant byte address 0x4 - core index']
  #allocation1 [shape = 'u32[144,128]{1,0:T(1,128)}', space=vmem, size = 0x12000, scoped, tag = 'internal scratch']
  #allocation2 [shape = 'f32[48,72]{1,0:T(8,128)}', space=vmem, size = 0x6000, scoped, tag = 'scratch operand']
  #allocation3 [shape = 'f32[24,72]{1,0:T(8,128)}', space=vmem, size = 0x3000, scoped, tag = 'scratch operand']
  #allocation4 [shape = 'f32[16,48]{1,0:T(8,128)}', space=vmem, size = 0x2000, scoped, tag = 'scratch operand']
  #allocation5 [shape = 'f32[8,48]{1,0:T(8,128)}', space=vmem, size = 0x1000, scoped, tag = 'scratch operand']
  %s0 = inlined_call_operand.hbm [shape: f32[56,28], index: 0, kind: input, shape index: {}]
  %s1 = inlined_call_operand.vmem [shape: bf16[140,256], index: 1, kind: input, shape index: {}]
  %s2 = inlined_call_operand.vmem [shape: f32[1,256], index: 2, kind: input, shape index: {}]
  %s3 = inlined_call_operand.hbm [shape: bf16[360,256], index: 3, kind: input, shape index: {}]
  %s4 = inlined_call_operand.vmem [shape: f32[1,256], index: 4, kind: input, shape index: {}]
  %s5 = inlined_call_operand.hbm [shape: bf16[192,120], index: 5, kind: input, shape index: {}]
  %s6 = inlined_call_operand.vmem [shape: f32[1,120], index: 6, kind: input, shape index: {}]
  %s7 = inlined_call_operand.vmem [shape: bf16[120,60], index: 7, kind: input, shape index: {}]
  %s8 = inlined_call_operand.vmem [shape: f32[1,60], index: 8, kind: input, shape index: {}]
  %s9 = inlined_call_operand.vmem [shape: bf16[60,10], index: 9, kind: input, shape index: {}]
  %s10 = inlined_call_operand.hbm [shape: f32[1,10], index: 10, kind: input, shape index: {}]
  %s11 = inlined_call_operand.hbm [shape: f32[2,10], index: 11, kind: output, shape index: {}]
  %s12 = sld [smem:[#allocation0]]
  $region70: #{fused_forward.1} parent=0
    _
  %s14 = ssub.s32 1, %s12
  %s15 = scalar_select 0, %s14, %s12
  $region1: #{fused_forward.1} parent=0
    #allocation6 [shape = 'u8[28672]{0}', space=vmem, size = 0x7000, scoped, tag = 'input window, operand 0, single buffered']
    #allocation7 [shape = 's32[1]{0}', space=sflag, size = 0x4, scoped, tag = 'scoped memory for fused_forward.1']
    #allocation8 [shape = 's32[1]{0}', space=sflag, size = 0x4, scoped, tag = 'scoped memory for fused_forward.1']
    #allocation9 [shape = 'u8[184320]{0}', space=vmem, size = 0x2d000, scoped, tag = 'input window, operand 3, single buffered']
    #allocation10 [shape = 's32[1]{0}', space=sflag, size = 0x4, scoped, tag = 'scoped memory for fused_forward.1']
    #allocation11 [shape = 'u8[49152]{0}', space=vmem, size = 0xc000, scoped, tag = 'input window, operand 5, single buffered']
    #allocation12 [shape = 'u8[512]{0}', space=vmem, size = 0x400, scoped, tag = 'input window, operand 10, single buffered']
    #allocation13 [shape = 's32[1]{0}', space=sflag, size = 0x4, scoped, tag = 'scoped memory for fused_forward.1']
    #allocation14 [shape = 'u8[1024]{0}', space=vmem, size = 0x400, scoped, tag = 'output window, operand 0, single buffered']
    %16 = vsyncpa [#allocation7], 0
    %17 = vsyncpa [#allocation10], 0
    %18 = vsyncpa [#allocation13], 0
    %19 = vsyncpa [#allocation8], 0
    // Predicated region
    $region2: #{fused_forward.1} parent=1 // pred_check
      _
    $region3: #{fused_forward.1} parent=1 // pred_check_branch
      %21 = sbr.rel (0) target = $region5
    $region4: #{fused_forward.1} parent=1 // pred_region
      %s23 = ssub.s32 896, 896
      %24 = vsyncadd [#allocation7], %s23
      %s25 = sshll.u32 [#allocation6], 4
      %s26 = int_to_ptr.vmem [resolvable:$true] %s25
      %31 = dma.hbm_to_vmem [thread:$0]  %s0, 896, %s26, [#allocation7], 128, 128, 8
    $region5: #{fused_forward.1} parent=1 // pred_fallthru
      _
    // Predicated region
    $region6: #{fused_forward.1} parent=1 // pred_check
      _
    $region7: #{fused_forward.1} parent=1 // pred_check_branch
      %33 = sbr.rel (0) target = $region9
    $region8: #{fused_forward.1} parent=1 // pred_region
      _
    $region9: #{fused_forward.1} parent=1 // pred_fallthru
      _
    // Predicated region
    $region10: #{fused_forward.1} parent=1 // pred_check
      _
    $region11: #{fused_forward.1} parent=1 // pred_check_branch
      %35 = sbr.rel (0) target = $region13
    $region12: #{fused_forward.1} parent=1 // pred_region
      _
    $region13: #{fused_forward.1} parent=1 // pred_fallthru
      _
    // Predicated region
    $region14: #{fused_forward.1} parent=1 // pred_check
      _
    $region15: #{fused_forward.1} parent=1 // pred_check_branch
      %37 = sbr.rel (0) target = $region17
    $region16: #{fused_forward.1} parent=1 // pred_region
      %s39 = ssub.s32 5760, 5760
      %40 = vsyncadd [#allocation10], %s39
      %s41 = sshll.u32 [#allocation9], 4
      %s42 = int_to_ptr.vmem [resolvable:$true] %s41
      %47 = dma.hbm_to_vmem [thread:$0]  %s3, 5760, %s42, [#allocation10], 128, 128, 8
    $region17: #{fused_forward.1} parent=1 // pred_fallthru
      _
    // Predicated region
    $region18: #{fused_forward.1} parent=1 // pred_check
      _
    $region19: #{fused_forward.1} parent=1 // pred_check_branch
      %49 = sbr.rel (0) target = $region21
    $region20: #{fused_forward.1} parent=1 // pred_region
      _
    $region21: #{fused_forward.1} parent=1 // pred_fallthru
      _
    // Predicated region
    $region22: #{fused_forward.1} parent=1 // pred_check
      _
    $region23: #{fused_forward.1} parent=1 // pred_check_branch
      %51 = sbr.rel (0) target = $region25
    $region24: #{fused_forward.1} parent=1 // pred_region
      %s53 = ssub.s32 1536, 1536
      %54 = vsyncadd [#allocation10], %s53
      %s55 = sshll.u32 [#allocation11], 4
      %s56 = int_to_ptr.vmem [resolvable:$true] %s55
      %61 = dma.hbm_to_vmem [thread:$0]  %s5, 1536, %s56, [#allocation10], 64, 64, 4
    $region25: #{fused_forward.1} parent=1 // pred_fallthru
      _
    // Predicated region
    $region26: #{fused_forward.1} parent=1 // pred_check
      _
    $region27: #{fused_forward.1} parent=1 // pred_check_branch
      %63 = sbr.rel (0) target = $region29
    $region28: #{fused_forward.1} parent=1 // pred_region
      _
    $region29: #{fused_forward.1} parent=1 // pred_fallthru
      _
    // Predicated region
    $region30: #{fused_forward.1} parent=1 // pred_check
      _
    $region31: #{fused_forward.1} parent=1 // pred_check_branch
      %65 = sbr.rel (0) target = $region33
    $region32: #{fused_forward.1} parent=1 // pred_region
      _
    $region33: #{fused_forward.1} parent=1 // pred_fallthru
      _
    // Predicated region
    $region34: #{fused_forward.1} parent=1 // pred_check
      _
    $region35: #{fused_forward.1} parent=1 // pred_check_branch
      %67 = sbr.rel (0) target = $region37
    $region36: #{fused_forward.1} parent=1 // pred_region
      _
    $region37: #{fused_forward.1} parent=1 // pred_fallthru
      _
    // Predicated region
    $region38: #{fused_forward.1} parent=1 // pred_check
      _
    $region39: #{fused_forward.1} parent=1 // pred_check_branch
      %69 = sbr.rel (0) target = $region41
    $region40: #{fused_forward.1} parent=1 // pred_region
      _
    $region41: #{fused_forward.1} parent=1 // pred_fallthru
      _
    // Predicated region
    $region42: #{fused_forward.1} parent=1 // pred_check
      _
    $region43: #{fused_forward.1} parent=1 // pred_check_branch
      %71 = sbr.rel (0) target = $region45
    $region44: #{fused_forward.1} parent=1 // pred_region
      %s73 = ssub.s32 16, 16
      %74 = vsyncadd [#allocation13], %s73
      %s76 = sshll.u32 [#allocation12], 4
      %s77 = int_to_ptr.vmem [resolvable:$true] %s76
      %79 = dma.hbm_to_vmem [thread:$0]  %s10, 16, %s77, [#allocation13]
    $region45: #{fused_forward.1} parent=1 // pred_fallthru
      _
    // Predicated region
    $region46: #{fused_forward.1} parent=1 // pred_check
      _
    $region47: #{fused_forward.1} parent=1 // pred_check_branch
      %81 = sbr.rel (0) target = $region49
    $region48: #{fused_forward.1} parent=1 // pred_region
      %82 = dma.done [#allocation7], 896
    $region49: #{fused_forward.1} parent=1 // pred_fallthru
      _
    // Predicated region
    $region50: #{fused_forward.1} parent=1 // pred_check
      _
    $region51: #{fused_forward.1} parent=1 // pred_check_branch
      %84 = sbr.rel (0) target = $region53
    $region52: #{fused_forward.1} parent=1 // pred_region
      %85 = dma.done [#allocation10], 5760
    $region53: #{fused_forward.1} parent=1 // pred_fallthru
      _
    // Predicated region
    $region54: #{fused_forward.1} parent=1 // pred_check
      _
    $region55: #{fused_forward.1} parent=1 // pred_check_branch
      %87 = sbr.rel (0) target = $region57
    $region56: #{fused_forward.1} parent=1 // pred_region
      %88 = dma.done [#allocation10], 1536
    $region57: #{fused_forward.1} parent=1 // pred_fallthru
      _
    // Predicated region
    $region58: #{fused_forward.1} parent=1 // pred_check
      _
    $region59: #{fused_forward.1} parent=1 // pred_check_branch
      %90 = sbr.rel (0) target = $region61
    $region60: #{fused_forward.1} parent=1 // pred_region
      %91 = dma.done [#allocation13], 16
    $region61: #{fused_forward.1} parent=1 // pred_fallthru
      _
    %v93 = vld [vmem:[#allocation6] sm:$0xff]
    %v94 = vld [vmem:[#allocation6 + $0x8] sm:$0xff]
    %v95 = vld [vmem:[#allocation6 + $0x10] sm:$0xff]
    %v96 = vld [vmem:[#allocation6 + $0x1] sm:$0xff]
    %v97 = vld [vmem:[#allocation6 + $0x9] sm:$0xff]
    %v98 = vld [vmem:[#allocation6 + $0x11] sm:$0xff]
    %v99 = vld [vmem:[#allocation6 + $0x2] sm:$0xff]
    %v100 = vld [vmem:[#allocation6 + $0xa] sm:$0xff]
    %v101 = vld [vmem:[#allocation6 + $0x12] sm:$0xff]
    %v102 = vld [vmem:[#allocation6 + $0x3] sm:$0xff]
    %v103 = vld [vmem:[#allocation6 + $0xb] sm:$0xff]
    %v104 = vld [vmem:[#allocation6 + $0x13] sm:$0xff]
    %v105 = vld [vmem:[#allocation6 + $0x4] sm:$0xff]
    %v106 = vld [vmem:[#allocation6 + $0xc] sm:$0xff]
    %v107 = vld [vmem:[#allocation6 + $0x14] sm:$0xff]
    %111 = vrot.lane.b32.xlu0 %v96, 28
    %v112 = vpop.permute.xlu0 %111
    %113 = vrot.lane.b32.xlu0 %v97, 28
    %v114 = vpop.permute.xlu0 %113
    %115 = vrot.lane.b32.xlu0 %v98, 28
    %v116 = vpop.permute.xlu0 %115
    %123 = vrot.lane.b32.xlu0 %v99, 56
    %v124 = vpop.permute.xlu0 %123
    %125 = vrot.lane.b32.xlu0 %v100, 56
    %v126 = vpop.permute.xlu0 %125
    %127 = vrot.lane.b32.xlu0 %v101, 56
    %v128 = vpop.permute.xlu0 %127
    %135 = vrot.lane.b32.xlu0 %v102, 84
    %v136 = vpop.permute.xlu0 %135
    %137 = vrot.lane.b32.xlu0 %v103, 84
    %v138 = vpop.permute.xlu0 %137
    %139 = vrot.lane.b32.xlu0 %v104, 84
    %v140 = vpop.permute.xlu0 %139
    %147 = vrot.lane.b32.xlu0 %v105, 112
    %v148 = vpop.permute.xlu0 %147
    %149 = vrot.lane.b32.xlu0 %v106, 112
    %v150 = vpop.permute.xlu0 %149
    %151 = vrot.lane.b32.xlu0 %v107, 112
    %v152 = vpop.permute.xlu0 %151
    %vm156 = vcmask 228352
    %v157 = vsel %vm156, %v93, %v112
    %v158 = vsel %vm156, %v94, %v114
    %v159 = vsel %vm156, %v95, %v116
    %vm160 = vcmask 457728
    %v161 = vsel %vm160, %v157, %v124
    %v162 = vsel %vm160, %v158, %v126
    %v163 = vsel %vm160, %v159, %v128
    %vm164 = vcmask 687104
    %v165 = vsel %vm164, %v161, %v136
    %v166 = vsel %vm164, %v162, %v138
    %v167 = vsel %vm164, %v163, %v140
    %vm168 = vcmask 916480
    %v169 = vsel %vm168, %v165, %v148
    %v170 = vsel %vm168, %v166, %v150
    %v171 = vsel %vm168, %v167, %v152
    %v172 = vld [vmem:[#allocation6 + $0x1c] sm:$0xff]
    %v173 = vld [vmem:[#allocation6 + $0x24] sm:$0xff]
    %v174 = vld [vmem:[#allocation6 + $0x2c] sm:$0xff]
    %v175 = vld [vmem:[#allocation6 + $0x1d] sm:$0xff]
    %v176 = vld [vmem:[#allocation6 + $0x25] sm:$0xff]
    %v177 = vld [vmem:[#allocation6 + $0x2d] sm:$0xff]
    %v178 = vld [vmem:[#allocation6 + $0x1e] sm:$0xff]
    %v179 = vld [vmem:[#allocation6 + $0x26] sm:$0xff]
    %v180 = vld [vmem:[#allocation6 + $0x2e] sm:$0xff]
    %v181 = vld [vmem:[#allocation6 + $0x1f] sm:$0xff]
    %v182 = vld [vmem:[#allocation6 + $0x27] sm:$0xff]
    %v183 = vld [vmem:[#allocation6 + $0x2f] sm:$0xff]
    %v184 = vld [vmem:[#allocation6 + $0x20] sm:$0xff]
    %v185 = vld [vmem:[#allocation6 + $0x28] sm:$0xff]
    %v186 = vld [vmem:[#allocation6 + $0x30] sm:$0xff]
    %190 = vrot.lane.b32.xlu0 %v175, 28
    %v191 = vpop.permute.xlu0 %190
    %192 = vrot.lane.b32.xlu0 %v176, 28
    %v193 = vpop.permute.xlu0 %192
    %194 = vrot.lane.b32.xlu0 %v177, 28
    %v195 = vpop.permute.xlu0 %194
    %202 = vrot.lane.b32.xlu0 %v178, 56
    %v203 = vpop.permute.xlu0 %202
    %204 = vrot.lane.b32.xlu0 %v179, 56
    %v205 = vpop.permute.xlu0 %204
    %206 = vrot.lane.b32.xlu0 %v180, 56
    %v207 = vpop.permute.xlu0 %206
    %214 = vrot.lane.b32.xlu0 %v181, 84
    %v215 = vpop.permute.xlu0 %214
    %216 = vrot.lane.b32.xlu0 %v182, 84
    %v217 = vpop.permute.xlu0 %216
    %218 = vrot.lane.b32.xlu0 %v183, 84
    %v219 = vpop.permute.xlu0 %218
    %226 = vrot.lane.b32.xlu0 %v184, 112
    %v227 = vpop.permute.xlu0 %226
    %228 = vrot.lane.b32.xlu0 %v185, 112
    %v229 = vpop.permute.xlu0 %228
    %230 = vrot.lane.b32.xlu0 %v186, 112
    %v231 = vpop.permute.xlu0 %230
    %v235 = vsel %vm156, %v172, %v191
    %v236 = vsel %vm156, %v173, %v193
    %v237 = vsel %vm156, %v174, %v195
    %v238 = vsel %vm160, %v235, %v203
    %v239 = vsel %vm160, %v236, %v205
    %v240 = vsel %vm160, %v237, %v207
    %v241 = vsel %vm164, %v238, %v215
    %v242 = vsel %vm164, %v239, %v217
    %v243 = vsel %vm164, %v240, %v219
    %v244 = vsel %vm168, %v241, %v227
    %v245 = vsel %vm168, %v242, %v229
    %v246 = vsel %vm168, %v243, %v231
    %v247 = vpack.c.bf16 %v170, %v169
    %v248 = vpack.c.bf16 %v150, %v148
    %v249 = vpack.c.bf16 %v244, %v171
    %v250 = vpack.c.bf16 %v227, %v152
    %v251 = vpack.c.bf16 %v246, %v245
    %v252 = vpack.c.bf16 %v231, %v229
    %v253 = vld [vmem:[%s1] sm:$0xff]
    %v254 = vld [vmem:[%s1 + $0x8] sm:$0xff]
    %v255 = vld [vmem:[%s1 + $0x10] sm:$0xff]
    %v256 = vld [vmem:[%s1 + $0x18] sm:$0xff]
    %v257 = vld [vmem:[%s1 + $0x20] sm:$0xff]
    %v258 = vld [vmem:[%s1 + $0x28] sm:$0xff]
    %v259 = vld [vmem:[%s1 + $0x30] sm:$0xff]
    %v260 = vld [vmem:[%s1 + $0x38] sm:$0xff]
    %v261 = vld [vmem:[%s1 + $0x40] sm:$0xff]
    %v262 = vld [vmem:[%s1 + $0x48] sm:$0xff]
    %v263 = vld [vmem:[%s1 + $0x50] sm:$0xff]
    %v264 = vld [vmem:[%s1 + $0x58] sm:$0xff]
    %v265 = vld [vmem:[%s1 + $0x60] sm:$0xff]
    %v266 = vld [vmem:[%s1 + $0x68] sm:$0xff]
    %v267 = vld [vmem:[%s1 + $0x70] sm:$0xff]
    %v268 = vld [vmem:[%s1 + $0x78] sm:$0xff]
    %v269 = vld [vmem:[%s1 + $0x80] sm:$0xff]
    %v270 = vld [vmem:[%s1 + $0x88] sm:$0x33]
    %v271 = vld [vmem:[%s2] sm:$0x3]
    %v273 = vlaneseq
    %v274 = vshrl.u32 %v273, 7
    %v275 = vsub.s32 0, %v274
    %v276 = vrot.slane %v271, %v275
    %v277 = vlaneseq
    %v278 = vshrl.u32 %v277, 7
    %v279 = vsub.s32 1, %v278
    %v280 = vrot.slane %v271, %v279
    %v301 = vunpack.c.l.b16 %v253
    %v302 = vunpack.c.h.b16 %v253
    %v303 = vunpack.c.l.b16 %v254
    %v304 = vunpack.c.h.b16 %v254
    %v305 = vunpack.c.l.b16 %v255
    %v306 = vunpack.c.h.b16 %v255
    %v307 = vunpack.c.l.b16 %v256
    %v308 = vunpack.c.h.b16 %v256
    %v309 = vunpack.c.l.b16 %v257
    %v310 = vunpack.c.h.b16 %v257
    %v311 = vunpack.c.l.b16 %v258
    %v312 = vunpack.c.h.b16 %v258
    %v313 = vunpack.c.l.b16 %v259
    %v314 = vunpack.c.h.b16 %v259
    %v315 = vunpack.c.l.b16 %v260
    %v316 = vunpack.c.h.b16 %v260
    %v317 = vunpack.c.l.b16 %v261
    %v318 = vunpack.c.h.b16 %v261
    %v319 = vunpack.c.l.b16 %v262
    %v320 = vunpack.c.h.b16 %v262
    %v321 = vunpack.c.l.b16 %v263
    %v322 = vunpack.c.h.b16 %v263
    %v323 = vunpack.c.l.b16 %v264
    %v324 = vunpack.c.h.b16 %v264
    %v325 = vunpack.c.l.b16 %v265
    %v326 = vunpack.c.h.b16 %v265
    %v327 = vunpack.c.l.b16 %v266
    %v328 = vunpack.c.h.b16 %v266
    %v329 = vunpack.c.l.b16 %v267
    %v330 = vunpack.c.h.b16 %v267
    %v331 = vunpack.c.l.b16 %v268
    %v332 = vunpack.c.h.b16 %v268
    %v333 = vunpack.c.l.b16 %v269
    %v334 = vunpack.c.h.b16 %v269
    %v335 = vunpack.c.l.b16 %v270
    %v336 = vunpack.c.h.b16 %v270
    %v337 = vpack.c.b16 %v303, %v301
    %v338 = vpack.c.b16 %v304, %v302
    %v339 = vpack.c.b16 %v307, %v305
    %v340 = vpack.c.b16 %v308, %v306
    %v341 = vpack.c.b16 %v311, %v309
    %v342 = vpack.c.b16 %v312, %v310
    %v343 = vpack.c.b16 %v315, %v313
    %v344 = vpack.c.b16 %v316, %v314
    %v345 = vpack.c.b16 %v319, %v317
    %v346 = vpack.c.b16 %v320, %v318
    %v347 = vpack.c.b16 %v323, %v321
    %v348 = vpack.c.b16 %v324, %v322
    %v349 = vpack.c.b16 %v327, %v325
    %v350 = vpack.c.b16 %v328, %v326
    %v351 = vpack.c.b16 %v331, %v329
    %v352 = vpack.c.b16 %v332, %v330
    %v353 = vpack.c.b16 %v335, %v333
    %v354 = vpack.c.b16 %v336, %v334
    %vm371 = vcmask 97280
    %v373 = vsel %vm371, %v248, 0
    %v376 = vsel %vm371, %v250, 0
    %v379 = vsel %vm371, %v252, 0
    %vm381 = vcmask 1045504
    %v383 = vsel %vm381, %v353, 0
    %v386 = vsel %vm381, %v354, 0
    %388 = vmatprep.subr.bf16.mxu0 %v338
    %389 = vmatpush1.bf16.msra.mxu0 %v337
    %390 = vmatprep.subr.bf16.mxu0 %v340
    %391 = vmatpush1.bf16.msra.mxu0 %v339
    %392 = vmatprep.subr.bf16.mxu0 %v342
    %393 = vmatpush1.bf16.msra.mxu0 %v341
    %394 = vmatprep.subr.bf16.mxu0 %v344
    %395 = vmatpush1.bf16.msra.mxu0 %v343
    %396 = vmatprep.subr.bf16.mxu0 %v346
    %397 = vmatpush1.bf16.msra.mxu0 %v345
    %398 = vmatprep.subr.bf16.mxu0 %v348
    %399 = vmatpush1.bf16.msra.mxu0 %v347
    %400 = vmatprep.subr.bf16.mxu0 %v350
    %401 = vmatpush1.bf16.msra.mxu0 %v349
    %402 = vmatprep.subr.bf16.mxu0 %v352
    %403 = vmatpush1.bf16.msra.mxu0 %v351
    %404 = vmatprep.subr.bf16.mxu0 %v386
    %405 = vmatpush1.bf16.msra.mxu0 %v383
    %406 = vmatprep.subr.bf16.mxu0 0
    %407 = vmatpush1.bf16.msra.mxu0 0
    %408 = vmatprep.subr.bf16.mxu0 0
    %409 = vmatpush1.bf16.msra.mxu0 0
    %410 = vmatprep.subr.bf16.mxu0 0
    %411 = vmatpush1.bf16.msra.mxu0 0
    %412 = vmatprep.subr.bf16.mxu0 0
    %413 = vmatpush1.bf16.msra.mxu0 0
    %414 = vmatprep.subr.bf16.mxu0 0
    %415 = vmatpush1.bf16.msra.mxu0 0
    %416 = vmatprep.subr.bf16.mxu0 0
    %417 = vmatpush1.bf16.msra.mxu0 0
    %418 = vmatprep.subr.bf16.mxu0 0
    %419 = vmatpush1.bf16.msra.mxu0 0
    %420 = vmatprep.mubr.bf16.mxu0 %v373
    %421 = vmatmul.mubr.bf16.gmra.mrb[0].mxu0 %v247
    %v422 = vpop.f32.mrb[0].mxu0
    %v423 = vadd.f32 %v276, %v422
    %v424 = vpop.f32.mrb[0].mxu0
    %v425 = vadd.f32 %v280, %v424
    %v426 = vpop.f32.mrb[0].mxu0
    %v427 = vadd.f32 %v276, %v426
    %v428 = vpop.f32.mrb[0].mxu0
    %v429 = vadd.f32 %v280, %v428
    %430 = vmatprep.mubr.bf16.mxu0 %v376
    %431 = vmatmul.mubr.bf16.gmra.mrb[0].mxu0 %v249
    %v432 = vpop.f32.mrb[0].mxu0
    %v433 = vadd.f32 %v276, %v432
    %v434 = vpop.f32.mrb[0].mxu0
    %v435 = vadd.f32 %v280, %v434
    %v436 = vpop.f32.mrb[0].mxu0
    %v437 = vadd.f32 %v276, %v436
    %v438 = vpop.f32.mrb[0].mxu0
    %v439 = vadd.f32 %v280, %v438
    %440 = vmatprep.mubr.bf16.mxu0 %v379
    %441 = vmatmul.mubr.bf16.gmra.mrb[0].mxu0 %v251
    %v442 = vpop.f32.mrb[0].mxu0
    %v443 = vadd.f32 %v276, %v442
    %v444 = vpop.f32.mrb[0].mxu0
    %v445 = vadd.f32 %v280, %v444
    %v446 = vpop.f32.mrb[0].mxu0
    %v447 = vadd.f32 %v276, %v446
    %v448 = vpop.f32.mrb[0].mxu0
    %v449 = vadd.f32 %v280, %v448
    %450 = vdwg.mxu0
    %v451 = vmax.f32 %v423, 0.0
    %v452 = vmax.f32 %v425, 0.0
    %v453 = vmax.f32 %v427, 0.0
    %v454 = vmax.f32 %v429, 0.0
    %v455 = vmax.f32 %v433, 0.0
    %v456 = vmax.f32 %v435, 0.0
    %v457 = vmax.f32 %v437, 0.0
    %v458 = vmax.f32 %v439, 0.0
    %v459 = vmax.f32 %v443, 0.0
    %v460 = vmax.f32 %v445, 0.0
    %v461 = vmax.f32 %v447, 0.0
    %v462 = vmax.f32 %v449, 0.0
    %v463 = vmax.f32 %v451, %v452
    %v464 = vmax.f32 %v453, %v454
    %v465 = vmax.f32 %v455, %v456
    %v466 = vmax.f32 %v457, %v458
    %v467 = vmax.f32 %v459, %v460
    %v468 = vmax.f32 %v461, %v462
    %vm469 = vcmask 588800
    %470 = vst.msk [vmem:[#allocation2] sm:$0xff] %vm469, %v463
    %471 = vst.msk [vmem:[#allocation2 + $0x8] sm:$0xff] %vm469, %v464
    %472 = vst.msk [vmem:[#allocation2 + $0x10] sm:$0xff] %vm469, %v465
    %473 = vst.msk [vmem:[#allocation2 + $0x18] sm:$0xff] %vm469, %v466
    %474 = vst.msk [vmem:[#allocation2 + $0x20] sm:$0xff] %vm469, %v467
    %475 = vst.msk [vmem:[#allocation2 + $0x28] sm:$0xff] %vm469, %v468
    %v476 = vld [vmem:[#allocation2] ss:$2 sm:$0xff]
    %s477 = scalar_lea.vmem [#allocation2], 16
    %v478 = vld [vmem:[%s477] ss:$2 sm:$0xff]
    %s479 = scalar_lea.vmem [#allocation2], 32
    %v480 = vld [vmem:[%s479] ss:$2 sm:$0xff]
    %s481 = scalar_lea.vmem [#allocation2], 1
    %v482 = vld [vmem:[%s481] ss:$2 sm:$0xff]
    %s483 = scalar_lea.vmem [#allocation2], 17
    %v484 = vld [vmem:[%s483] ss:$2 sm:$0xff]
    %s485 = scalar_lea.vmem [#allocation2], 33
    %v486 = vld [vmem:[%s485] ss:$2 sm:$0xff]
    %v487 = vmax.f32 %v476, %v482
    %v488 = vmax.f32 %v478, %v484
    %v489 = vmax.f32 %v480, %v486
    %490 = vst.msk [vmem:[#allocation3] sm:$0xff] %vm469, %v487
    %491 = vst.msk [vmem:[#allocation3 + $0x8] sm:$0xff] %vm469, %v488
    %492 = vst.msk [vmem:[#allocation3 + $0x10] sm:$0xff] %vm469, %v489
    %v493 = vld [vmem:[#allocation3] sm:$0xff]
    %v494 = vld [vmem:[#allocation3 + $0x1] sm:$0xff]
    %v495 = vld [vmem:[#allocation3 + $0x2] sm:$0xff]
    %v496 = vld [vmem:[#allocation3 + $0x3] sm:$0xff]
    %v497 = vld [vmem:[#allocation3 + $0x4] sm:$0xff]
    %499 = vrot.lane.b32.xlu0 %v494, 72
    %v500 = vpop.permute.xlu0 %499
    %503 = vrot.lane.b32.xlu0 %v495, 16
    %v504 = vpop.permute.xlu0 %503
    %507 = vrot.lane.b32.xlu0 %v496, 88
    %v508 = vpop.permute.xlu0 %507
    %511 = vrot.lane.b32.xlu0 %v497, 32
    %v512 = vpop.permute.xlu0 %511
    %v514 = vsel %vm469, %v493, %v500
    %vm515 = vcmask 130048
    %v516 = vsel %vm515, %v500, %v504
    %vm517 = vcmask 719872
    %v518 = vsel %vm517, %v516, %v508
    %vm519 = vcmask 261120
    %v520 = vsel %vm519, %v508, %v512
    %v521 = vld [vmem:[#allocation3 + $0xc] sm:$0xff]
    %v522 = vld [vmem:[#allocation3 + $0xd] sm:$0xff]
    %v523 = vld [vmem:[#allocation3 + $0xe] sm:$0xff]
    %v524 = vld [vmem:[#allocation3 + $0xf] sm:$0xff]
    %v525 = vld [vmem:[#allocation3 + $0x10] sm:$0xff]
    %527 = vrot.lane.b32.xlu0 %v522, 72
    %v528 = vpop.permute.xlu0 %527
    %531 = vrot.lane.b32.xlu0 %v523, 16
    %v532 = vpop.permute.xlu0 %531
    %535 = vrot.lane.b32.xlu0 %v524, 88
    %v536 = vpop.permute.xlu0 %535
    %539 = vrot.lane.b32.xlu0 %v525, 32
    %v540 = vpop.permute.xlu0 %539
    %v542 = vsel %vm469, %v521, %v528
    %v543 = vsel %vm515, %v528, %v532
    %v544 = vsel %vm517, %v543, %v536
    %v545 = vsel %vm519, %v536, %v540
    %v546 = vpack.c.bf16 %v542, %v514
    %v547 = vpack.c.bf16 %v544, %v518
    %v548 = vpack.c.bf16 %v545, %v520
    %v549 = vld [vmem:[#allocation9] sm:$0xff]
    %v550 = vld [vmem:[#allocation9 + $0x8] sm:$0xff]
    %v551 = vld [vmem:[#allocation9 + $0x10] sm:$0xff]
    %v552 = vld [vmem:[#allocation9 + $0x18] sm:$0xff]
    %v553 = vld [vmem:[#allocation9 + $0x20] sm:$0xff]
    %v554 = vld [vmem:[#allocation9 + $0x28] sm:$0xff]
    %v555 = vld [vmem:[#allocation9 + $0x30] sm:$0xff]
    %v556 = vld [vmem:[#allocation9 + $0x38] sm:$0xff]
    %v557 = vld [vmem:[#allocation9 + $0x40] sm:$0xff]
    %v558 = vld [vmem:[#allocation9 + $0x48] sm:$0xff]
    %v559 = vld [vmem:[#allocation9 + $0x50] sm:$0xff]
    %v560 = vld [vmem:[#allocation9 + $0x58] sm:$0xff]
    %v561 = vld [vmem:[#allocation9 + $0x60] sm:$0xff]
    %v562 = vld [vmem:[#allocation9 + $0x68] sm:$0xff]
    %v563 = vld [vmem:[#allocation9 + $0x70] sm:$0xff]
    %v564 = vld [vmem:[#allocation9 + $0x78] sm:$0xff]
    %v565 = vld [vmem:[#allocation9 + $0x80] sm:$0xff]
    %v566 = vld [vmem:[#allocation9 + $0x88] sm:$0xff]
    %v567 = vld [vmem:[#allocation9 + $0x90] sm:$0xff]
    %v568 = vld [vmem:[#allocation9 + $0x98] sm:$0xff]
    %v569 = vld [vmem:[#allocation9 + $0xa0] sm:$0xff]
    %v570 = vld [vmem:[#allocation9 + $0xa8] sm:$0xff]
    %v571 = vld [vmem:[#allocation9 + $0xb0] sm:$0xff]
    %v572 = vld [vmem:[#allocation9 + $0xb8] sm:$0xff]
    %v573 = vld [vmem:[#allocation9 + $0xc0] sm:$0xff]
    %v574 = vld [vmem:[#allocation9 + $0xc8] sm:$0xff]
    %v575 = vld [vmem:[#allocation9 + $0xd0] sm:$0xff]
    %v576 = vld [vmem:[#allocation9 + $0xd8] sm:$0xff]
    %v577 = vld [vmem:[#allocation9 + $0xe0] sm:$0xff]
    %v578 = vld [vmem:[#allocation9 + $0xe8] sm:$0xff]
    %v579 = vld [vmem:[#allocation9 + $0xf0] sm:$0xff]
    %v580 = vld [vmem:[#allocation9 + $0xf8] sm:$0xff]
    %v581 = vld [vmem:[#allocation9 + $0x100] sm:$0xff]
    %v582 = vld [vmem:[#allocation9 + $0x108] sm:$0xff]
    %v583 = vld [vmem:[#allocation9 + $0x110] sm:$0xff]
    %v584 = vld [vmem:[#allocation9 + $0x118] sm:$0xff]
    %v585 = vld [vmem:[#allocation9 + $0x120] sm:$0xff]
    %v586 = vld [vmem:[#allocation9 + $0x128] sm:$0xff]
    %v587 = vld [vmem:[#allocation9 + $0x130] sm:$0xff]
    %v588 = vld [vmem:[#allocation9 + $0x138] sm:$0xff]
    %v589 = vld [vmem:[#allocation9 + $0x140] sm:$0xff]
    %v590 = vld [vmem:[#allocation9 + $0x148] sm:$0xff]
    %v591 = vld [vmem:[#allocation9 + $0x150] sm:$0xff]
    %v592 = vld [vmem:[#allocation9 + $0x158] sm:$0xff]
    %v593 = vld [vmem:[#allocation9 + $0x160] sm:$0xff]
    %v594 = vld [vmem:[%s4] sm:$0x3]
    %v596 = vlaneseq
    %v597 = vshrl.u32 %v596, 7
    %v598 = vsub.s32 0, %v597
    %v599 = vrot.slane %v594, %v598
    %v600 = vlaneseq
    %v601 = vshrl.u32 %v600, 7
    %v602 = vsub.s32 1, %v601
    %v603 = vrot.slane %v594, %v602
    %v651 = vunpack.c.l.b16 %v549
    %v652 = vunpack.c.h.b16 %v549
    %v653 = vunpack.c.l.b16 %v550
    %v654 = vunpack.c.h.b16 %v550
    %v655 = vunpack.c.l.b16 %v551
    %v656 = vunpack.c.h.b16 %v551
    %v657 = vunpack.c.l.b16 %v552
    %v658 = vunpack.c.h.b16 %v552
    %v659 = vunpack.c.l.b16 %v553
    %v660 = vunpack.c.h.b16 %v553
    %v661 = vunpack.c.l.b16 %v554
    %v662 = vunpack.c.h.b16 %v554
    %v663 = vunpack.c.l.b16 %v555
    %v664 = vunpack.c.h.b16 %v555
    %v665 = vunpack.c.l.b16 %v556
    %v666 = vunpack.c.h.b16 %v556
    %v667 = vunpack.c.l.b16 %v557
    %v668 = vunpack.c.h.b16 %v557
    %v669 = vunpack.c.l.b16 %v558
    %v670 = vunpack.c.h.b16 %v558
    %v671 = vunpack.c.l.b16 %v559
    %v672 = vunpack.c.h.b16 %v559
    %v673 = vunpack.c.l.b16 %v560
    %v674 = vunpack.c.h.b16 %v560
    %v675 = vunpack.c.l.b16 %v561
    %v676 = vunpack.c.h.b16 %v561
    %v677 = vunpack.c.l.b16 %v562
    %v678 = vunpack.c.h.b16 %v562
    %v679 = vunpack.c.l.b16 %v563
    %v680 = vunpack.c.h.b16 %v563
    %v681 = vunpack.c.l.b16 %v564
    %v682 = vunpack.c.h.b16 %v564
    %v683 = vunpack.c.l.b16 %v565
    %v684 = vunpack.c.h.b16 %v565
    %v685 = vunpack.c.l.b16 %v566
    %v686 = vunpack.c.h.b16 %v566
    %v687 = vunpack.c.l.b16 %v567
    %v688 = vunpack.c.h.b16 %v567
    %v689 = vunpack.c.l.b16 %v568
    %v690 = vunpack.c.h.b16 %v568
    %v691 = vunpack.c.l.b16 %v569
    %v692 = vunpack.c.h.b16 %v569
    %v693 = vunpack.c.l.b16 %v570
    %v694 = vunpack.c.h.b16 %v570
    %v695 = vunpack.c.l.b16 %v571
    %v696 = vunpack.c.h.b16 %v571
    %v697 = vunpack.c.l.b16 %v572
    %v698 = vunpack.c.h.b16 %v572
    %v699 = vunpack.c.l.b16 %v573
    %v700 = vunpack.c.h.b16 %v573
    %v701 = vunpack.c.l.b16 %v574
    %v702 = vunpack.c.h.b16 %v574
    %v703 = vunpack.c.l.b16 %v575
    %v704 = vunpack.c.h.b16 %v575
    %v705 = vunpack.c.l.b16 %v576
    %v706 = vunpack.c.h.b16 %v576
    %v707 = vunpack.c.l.b16 %v577
    %v708 = vunpack.c.h.b16 %v577
    %v709 = vunpack.c.l.b16 %v578
    %v710 = vunpack.c.h.b16 %v578
    %v711 = vunpack.c.l.b16 %v579
    %v712 = vunpack.c.h.b16 %v579
    %v713 = vunpack.c.l.b16 %v580
    %v714 = vunpack.c.h.b16 %v580
    %v715 = vunpack.c.l.b16 %v581
    %v716 = vunpack.c.h.b16 %v581
    %v717 = vunpack.c.l.b16 %v582
    %v718 = vunpack.c.h.b16 %v582
    %v719 = vunpack.c.l.b16 %v583
    %v720 = vunpack.c.h.b16 %v583
    %v721 = vunpack.c.l.b16 %v584
    %v722 = vunpack.c.h.b16 %v584
    %v723 = vunpack.c.l.b16 %v585
    %v724 = vunpack.c.h.b16 %v585
    %v725 = vunpack.c.l.b16 %v586
    %v726 = vunpack.c.h.b16 %v586
    %v727 = vunpack.c.l.b16 %v587
    %v728 = vunpack.c.h.b16 %v587
    %v729 = vunpack.c.l.b16 %v588
    %v730 = vunpack.c.h.b16 %v588
    %v731 = vunpack.c.l.b16 %v589
    %v732 = vunpack.c.h.b16 %v589
    %v733 = vunpack.c.l.b16 %v590
    %v734 = vunpack.c.h.b16 %v590
    %v735 = vunpack.c.l.b16 %v591
    %v736 = vunpack.c.h.b16 %v591
    %v737 = vunpack.c.l.b16 %v592
    %v738 = vunpack.c.h.b16 %v592
    %v739 = vunpack.c.l.b16 %v593
    %v740 = vunpack.c.h.b16 %v593
    %v741 = vpack.c.b16 %v653, %v651
    %v742 = vpack.c.b16 %v654, %v652
    %v743 = vpack.c.b16 %v657, %v655
    %v744 = vpack.c.b16 %v658, %v656
    %v745 = vpack.c.b16 %v661, %v659
    %v746 = vpack.c.b16 %v662, %v660
    %v747 = vpack.c.b16 %v665, %v663
    %v748 = vpack.c.b16 %v666, %v664
    %v749 = vpack.c.b16 %v669, %v667
    %v750 = vpack.c.b16 %v670, %v668
    %v751 = vpack.c.b16 %v673, %v671
    %v752 = vpack.c.b16 %v674, %v672
    %v753 = vpack.c.b16 %v677, %v675
    %v754 = vpack.c.b16 %v678, %v676
    %v755 = vpack.c.b16 %v681, %v679
    %v756 = vpack.c.b16 %v682, %v680
    %v757 = vpack.c.b16 %v685, %v683
    %v758 = vpack.c.b16 %v686, %v684
    %v759 = vpack.c.b16 %v689, %v687
    %v760 = vpack.c.b16 %v690, %v688
    %v761 = vpack.c.b16 %v693, %v691
    %v762 = vpack.c.b16 %v694, %v692
    %v763 = vpack.c.b16 %v697, %v695
    %v764 = vpack.c.b16 %v698, %v696
    %v765 = vpack.c.b16 %v701, %v699
    %v766 = vpack.c.b16 %v702, %v700
    %v767 = vpack.c.b16 %v705, %v703
    %v768 = vpack.c.b16 %v706, %v704
    %v769 = vpack.c.b16 %v709, %v707
    %v770 = vpack.c.b16 %v710, %v708
    %v771 = vpack.c.b16 %v713, %v711
    %v772 = vpack.c.b16 %v714, %v712
    %v773 = vpack.c.b16 %v717, %v715
    %v774 = vpack.c.b16 %v718, %v716
    %v775 = vpack.c.b16 %v721, %v719
    %v776 = vpack.c.b16 %v722, %v720
    %v777 = vpack.c.b16 %v725, %v723
    %v778 = vpack.c.b16 %v726, %v724
    %v779 = vpack.c.b16 %v729, %v727
    %v780 = vpack.c.b16 %v730, %v728
    %v781 = vpack.c.b16 %v733, %v731
    %v782 = vpack.c.b16 %v734, %v732
    %v783 = vpack.c.b16 %v737, %v735
    %v784 = vpack.c.b16 %v738, %v736
    %v785 = vpack.c.b16 %v739, %v739
    %v786 = vpack.c.b16 %v740, %v740
    %vm831 = vcmask 850944
    %v833 = vsel %vm831, %v548, 0
    %vm835 = vcmask 1043456
    %v837 = vsel %vm835, %v785, 0
    %v840 = vsel %vm835, %v786, 0
    %842 = vmatprep.subr.bf16.mxu0 %v742
    %843 = vmatpush1.bf16.msra.mxu0 %v741
    %844 = vmatprep.subr.bf16.mxu0 %v744
    %845 = vmatpush1.bf16.msra.mxu0 %v743
    %846 = vmatprep.subr.bf16.mxu0 %v746
    %847 = vmatpush1.bf16.msra.mxu0 %v745
    %848 = vmatprep.subr.bf16.mxu0 %v748
    %849 = vmatpush1.bf16.msra.mxu0 %v747
    %850 = vmatprep.subr.bf16.mxu0 %v750
    %851 = vmatpush1.bf16.msra.mxu0 %v749
    %852 = vmatprep.subr.bf16.mxu0 %v752
    %853 = vmatpush1.bf16.msra.mxu0 %v751
    %854 = vmatprep.subr.bf16.mxu0 %v754
    %855 = vmatpush1.bf16.msra.mxu0 %v753
    %856 = vmatprep.subr.bf16.mxu0 %v756
    %857 = vmatpush1.bf16.msra.mxu0 %v755
    %858 = vmatprep.subr.bf16.mxu0 %v758
    %859 = vmatpush1.bf16.msra.mxu0 %v757
    %860 = vmatprep.subr.bf16.mxu0 %v760
    %861 = vmatpush1.bf16.msra.mxu0 %v759
    %862 = vmatprep.subr.bf16.mxu0 %v762
    %863 = vmatpush1.bf16.msra.mxu0 %v761
    %864 = vmatprep.subr.bf16.mxu0 %v764
    %865 = vmatpush1.bf16.msra.mxu0 %v763
    %866 = vmatprep.subr.bf16.mxu0 %v766
    %867 = vmatpush1.bf16.msra.mxu0 %v765
    %868 = vmatprep.subr.bf16.mxu0 %v768
    %869 = vmatpush1.bf16.msra.mxu0 %v767
    %870 = vmatprep.subr.bf16.mxu0 %v770
    %871 = vmatpush1.bf16.msra.mxu0 %v769
    %872 = vmatprep.subr.bf16.mxu0 %v772
    %873 = vmatpush1.bf16.msra.mxu0 %v771
    %874 = vmatprep.mubr.bf16.mxu0 %v547
    %875 = vmatmul.mubr.bf16.gmra.mrb[0].mxu0 %v546
    %v876 = vpop.f32.mrb[0].mxu0
    %v877 = vadd.f32 %v599, %v876
    %v878 = vpop.f32.mrb[0].mxu0
    %v879 = vadd.f32 %v603, %v878
    %v880 = vpop.f32.mrb[0].mxu0
    %v881 = vadd.f32 %v599, %v880
    %v882 = vpop.f32.mrb[0].mxu0
    %v883 = vadd.f32 %v603, %v882
    %884 = vdwg.mxu0
    %885 = vmatprep.subr.bf16.mxu0 %v774
    %886 = vmatpush1.bf16.msra.mxu0 %v773
    %887 = vmatprep.subr.bf16.mxu0 %v776
    %888 = vmatpush1.bf16.msra.mxu0 %v775
    %889 = vmatprep.subr.bf16.mxu0 %v778
    %890 = vmatpush1.bf16.msra.mxu0 %v777
    %891 = vmatprep.subr.bf16.mxu0 %v780
    %892 = vmatpush1.bf16.msra.mxu0 %v779
    %893 = vmatprep.subr.bf16.mxu0 %v782
    %894 = vmatpush1.bf16.msra.mxu0 %v781
    %895 = vmatprep.subr.bf16.mxu0 %v784
    %896 = vmatpush1.bf16.msra.mxu0 %v783
    %897 = vmatprep.subr.bf16.mxu0 %v840
    %898 = vmatpush1.bf16.msra.mxu0 %v837
    %899 = vmatprep.subr.bf16.mxu0 0
    %900 = vmatpush1.bf16.msra.mxu0 0
    %901 = vmatprep.subr.bf16.mxu0 0
    %902 = vmatpush1.bf16.msra.mxu0 0
    %903 = vmatprep.subr.bf16.mxu0 0
    %904 = vmatpush1.bf16.msra.mxu0 0
    %905 = vmatprep.subr.bf16.mxu0 0
    %906 = vmatpush1.bf16.msra.mxu0 0
    %907 = vmatprep.subr.bf16.mxu0 0
    %908 = vmatpush1.bf16.msra.mxu0 0
    %909 = vmatprep.subr.bf16.mxu0 0
    %910 = vmatpush1.bf16.msra.mxu0 0
    %911 = vmatprep.subr.bf16.mxu0 0
    %912 = vmatpush1.bf16.msra.mxu0 0
    %913 = vmatprep.subr.bf16.mxu0 0
    %914 = vmatpush1.bf16.msra.mxu0 0
    %915 = vmatprep.subr.bf16.mxu0 0
    %916 = vmatpush1.bf16.msra.mxu0 0
    %917 = vmatprep.mubr.bf16.mxu0 0
    %918 = vmatmul.mubr.bf16.gmra.mrb[0].mxu0 %v833
    %v919 = vpop.f32.mrb[0].mxu0
    %v920 = vadd.f32 %v877, %v919
    %v921 = vpop.f32.mrb[0].mxu0
    %v922 = vadd.f32 %v879, %v921
    %v923 = vpop.f32.mrb[0].mxu0
    %v924 = vadd.f32 %v881, %v923
    %v925 = vpop.f32.mrb[0].mxu0
    %v926 = vadd.f32 %v883, %v925
    %927 = vdwg.mxu0
    %v928 = vmax.f32 %v920, 0.0
    %v929 = vmax.f32 %v922, 0.0
    %v930 = vmax.f32 %v924, 0.0
    %v931 = vmax.f32 %v926, 0.0
    %v932 = vmax.f32 %v928, %v929
    %v933 = vmax.f32 %v930, %v931
    %vm934 = vcmask 392192
    %935 = vst.msk [vmem:[#allocation4] sm:$0xff] %vm934, %v932
    %936 = vst.msk [vmem:[#allocation4 + $0x8] sm:$0xff] %vm934, %v933
    %v937 = vld [vmem:[#allocation4] ss:$2 sm:$0xff]
    %s938 = scalar_lea.vmem [#allocation4], 1
    %v939 = vld [vmem:[%s938] ss:$2 sm:$0xff]
    %v940 = vmax.f32 %v937, %v939
    %941 = vst.msk [vmem:[#allocation5] sm:$0xff] %vm934, %v940
    %v942 = vld [vmem:[#allocation5] ss:$4 sm:$0x3]
    %s943 = scalar_lea.vmem [#allocation5], 1
    %v944 = vld [vmem:[%s943] ss:$4 sm:$0x3]
    %s945 = scalar_lea.vmem [#allocation5], 2
    %v946 = vld [vmem:[%s945] ss:$4 sm:$0x3]
    %s947 = scalar_lea.vmem [#allocation5], 3
    %v948 = vld [vmem:[%s947] ss:$4 sm:$0x3]
    %950 = vrot.lane.b32.xlu0 %v944, 48
    %v951 = vpop.permute.xlu0 %950
    %954 = vrot.lane.b32.xlu0 %v946, 96
    %v955 = vpop.permute.xlu0 %954
    %958 = vrot.lane.b32.xlu0 %v948, 16
    %v959 = vpop.permute.xlu0 %958
    %v961 = vsel %vm934, %v942, %v951
    %vm962 = vcmask 785408
    %v963 = vsel %vm962, %v961, %v955
    %v964 = vsel %vm515, %v955, %v959
    %v965 = vpack.c.bf16 %v963, %v963
    %v966 = vpack.c.bf16 %v964, %v964
    %v967 = vld [vmem:[#allocation11] sm:$0xf]
    %v968 = vld [vmem:[#allocation11 + $0x4] sm:$0xf]
    %v969 = vld [vmem:[#allocation11 + $0x8] sm:$0xf]
    %v970 = vld [vmem:[#allocation11 + $0xc] sm:$0xf]
    %v971 = vld [vmem:[#allocation11 + $0x10] sm:$0xf]
    %v972 = vld [vmem:[#allocation11 + $0x14] sm:$0xf]
    %v973 = vld [vmem:[#allocation11 + $0x18] sm:$0xf]
    %v974 = vld [vmem:[#allocation11 + $0x1c] sm:$0xf]
    %v975 = vld [vmem:[#allocation11 + $0x20] sm:$0xf]
    %v976 = vld [vmem:[#allocation11 + $0x24] sm:$0xf]
    %v977 = vld [vmem:[#allocation11 + $0x28] sm:$0xf]
    %v978 = vld [vmem:[#allocation11 + $0x2c] sm:$0xf]
    %v979 = vld [vmem:[#allocation11 + $0x30] sm:$0xf]
    %v980 = vld [vmem:[#allocation11 + $0x34] sm:$0xf]
    %v981 = vld [vmem:[#allocation11 + $0x38] sm:$0xf]
    %v982 = vld [vmem:[#allocation11 + $0x3c] sm:$0xf]
    %v983 = vld [vmem:[#allocation11 + $0x40] sm:$0xf]
    %v984 = vld [vmem:[#allocation11 + $0x44] sm:$0xf]
    %v985 = vld [vmem:[#allocation11 + $0x48] sm:$0xf]
    %v986 = vld [vmem:[#allocation11 + $0x4c] sm:$0xf]
    %v987 = vld [vmem:[#allocation11 + $0x50] sm:$0xf]
    %v988 = vld [vmem:[#allocation11 + $0x54] sm:$0xf]
    %v989 = vld [vmem:[#allocation11 + $0x58] sm:$0xf]
    %v990 = vld [vmem:[#allocation11 + $0x5c] sm:$0xf]
    %v991 = vld [vmem:[%s6] sm:$0x1]
    %v993 = vlaneseq
    %v994 = vshrl.u32 %v993, 7
    %v995 = vsub.s32 0, %v994
    %v996 = vrot.slane %v991, %v995
    %v1022 = vunpack.c.l.b16 %v967
    %v1023 = vunpack.c.l.b16 %v968
    %v1024 = vunpack.c.l.b16 %v969
    %v1025 = vunpack.c.l.b16 %v970
    %v1026 = vunpack.c.l.b16 %v971
    %v1027 = vunpack.c.l.b16 %v972
    %v1028 = vunpack.c.l.b16 %v973
    %v1029 = vunpack.c.l.b16 %v974
    %v1030 = vunpack.c.l.b16 %v975
    %v1031 = vunpack.c.l.b16 %v976
    %v1032 = vunpack.c.l.b16 %v977
    %v1033 = vunpack.c.l.b16 %v978
    %v1034 = vunpack.c.l.b16 %v979
    %v1035 = vunpack.c.l.b16 %v980
    %v1036 = vunpack.c.l.b16 %v981
    %v1037 = vunpack.c.l.b16 %v982
    %v1038 = vunpack.c.l.b16 %v983
    %v1039 = vunpack.c.l.b16 %v984
    %v1040 = vunpack.c.l.b16 %v985
    %v1041 = vunpack.c.l.b16 %v986
    %v1042 = vunpack.c.l.b16 %v987
    %v1043 = vunpack.c.l.b16 %v988
    %v1044 = vunpack.c.l.b16 %v989
    %v1045 = vunpack.c.l.b16 %v990
    %v1046 = vpack.c.b16 %v1023, %v1022
    %v1047 = vpack.c.b16 %v1025, %v1024
    %v1048 = vpack.c.b16 %v1027, %v1026
    %v1049 = vpack.c.b16 %v1029, %v1028
    %v1050 = vpack.c.b16 %v1031, %v1030
    %v1051 = vpack.c.b16 %v1033, %v1032
    %v1052 = vpack.c.b16 %v1035, %v1034
    %v1053 = vpack.c.b16 %v1037, %v1036
    %v1054 = vpack.c.b16 %v1039, %v1038
    %v1055 = vpack.c.b16 %v1041, %v1040
    %v1056 = vpack.c.b16 %v1043, %v1042
    %v1057 = vpack.c.b16 %v1045, %v1044
    %vm1070 = vcmask 523264
    %v1072 = vsel %vm1070, %v966, 0
    %1074 = vmatprep.subr.bf16.mxu0 0
    %1075 = vmatpush1.bf16.msra.mxu0 %v1046
    %1076 = vmatprep.subr.bf16.mxu0 0
    %1077 = vmatpush1.bf16.msra.mxu0 %v1047
    %1078 = vmatprep.subr.bf16.mxu0 0
    %1079 = vmatpush1.bf16.msra.mxu0 %v1048
    %1080 = vmatprep.subr.bf16.mxu0 0
    %1081 = vmatpush1.bf16.msra.mxu0 %v1049
    %1082 = vmatprep.subr.bf16.mxu0 0
    %1083 = vmatpush1.bf16.msra.mxu0 %v1050
    %1084 = vmatprep.subr.bf16.mxu0 0
    %1085 = vmatpush1.bf16.msra.mxu0 %v1051
    %1086 = vmatprep.subr.bf16.mxu0 0
    %1087 = vmatpush1.bf16.msra.mxu0 %v1052
    %1088 = vmatprep.subr.bf16.mxu0 0
    %1089 = vmatpush1.bf16.msra.mxu0 %v1053
    %1090 = vmatprep.subr.bf16.mxu0 0
    %1091 = vmatpush1.bf16.msra.mxu0 %v1054
    %1092 = vmatprep.subr.bf16.mxu0 0
    %1093 = vmatpush1.bf16.msra.mxu0 %v1055
    %1094 = vmatprep.subr.bf16.mxu0 0
    %1095 = vmatpush1.bf16.msra.mxu0 %v1056
    %1096 = vmatprep.subr.bf16.mxu0 0
    %1097 = vmatpush1.bf16.msra.mxu0 %v1057
    %1098 = vmatprep.subr.bf16.mxu0 0
    %1099 = vmatpush1.bf16.msra.mxu0 0
    %1100 = vmatprep.subr.bf16.mxu0 0
    %1101 = vmatpush1.bf16.msra.mxu0 0
    %1102 = vmatprep.subr.bf16.mxu0 0
    %1103 = vmatpush1.bf16.msra.mxu0 0
    %1104 = vmatprep.subr.bf16.mxu0 0
    %1105 = vmatpush1.bf16.msra.mxu0 0
    %1106 = vmatprep.mubr.bf16.mxu0 %v1072
    %1107 = vmatmul.mubr.bf16.gmra.mrb[0].mxu0 %v965
    %v1108 = vpop.f32.mrb[0].mxu0
    %v1109 = vadd.f32 %v996, %v1108
    %v1110 = vpop.f32.mrb[0].mxu0
    %v1111 = vpop.f32.mrb[0].mxu0
    %v1112 = vpop.f32.mrb[0].mxu0
    %1113 = vdwg.mxu0
    %v1114 = vmax.f32 %v1109, 0.0
    %v1115 = vpack.c.bf16 %v1114, %v1114
    %v1116 = vld [vmem:[%s7] sm:$0xf]
    %v1117 = vld [vmem:[%s7 + $0x4] sm:$0xf]
    %v1118 = vld [vmem:[%s7 + $0x8] sm:$0xf]
    %v1119 = vld [vmem:[%s7 + $0xc] sm:$0xf]
    %v1120 = vld [vmem:[%s7 + $0x10] sm:$0xf]
    %v1121 = vld [vmem:[%s7 + $0x14] sm:$0xf]
    %v1122 = vld [vmem:[%s7 + $0x18] sm:$0xf]
    %v1123 = vld [vmem:[%s7 + $0x1c] sm:$0xf]
    %v1124 = vld [vmem:[%s7 + $0x20] sm:$0xf]
    %v1125 = vld [vmem:[%s7 + $0x24] sm:$0xf]
    %v1126 = vld [vmem:[%s7 + $0x28] sm:$0xf]
    %v1127 = vld [vmem:[%s7 + $0x2c] sm:$0xf]
    %v1128 = vld [vmem:[%s7 + $0x30] sm:$0xf]
    %v1129 = vld [vmem:[%s7 + $0x34] sm:$0xf]
    %v1130 = vld [vmem:[%s7 + $0x38] sm:$0xf]
    %v1131 = vld [vmem:[%s8] sm:$0x1]
    %v1133 = vlaneseq
    %v1134 = vshrl.u32 %v1133, 7
    %v1135 = vsub.s32 0, %v1134
    %v1136 = vrot.slane %v1131, %v1135
    %v1153 = vunpack.c.l.b16 %v1116
    %v1154 = vunpack.c.l.b16 %v1117
    %v1155 = vunpack.c.l.b16 %v1118
    %v1156 = vunpack.c.l.b16 %v1119
    %v1157 = vunpack.c.l.b16 %v1120
    %v1158 = vunpack.c.l.b16 %v1121
    %v1159 = vunpack.c.l.b16 %v1122
    %v1160 = vunpack.c.l.b16 %v1123
    %v1161 = vunpack.c.l.b16 %v1124
    %v1162 = vunpack.c.l.b16 %v1125
    %v1163 = vunpack.c.l.b16 %v1126
    %v1164 = vunpack.c.l.b16 %v1127
    %v1165 = vunpack.c.l.b16 %v1128
    %v1166 = vunpack.c.l.b16 %v1129
    %v1167 = vunpack.c.l.b16 %v1130
    %v1168 = vpack.c.b16 %v1154, %v1153
    %v1169 = vpack.c.b16 %v1156, %v1155
    %v1170 = vpack.c.b16 %v1158, %v1157
    %v1171 = vpack.c.b16 %v1160, %v1159
    %v1172 = vpack.c.b16 %v1162, %v1161
    %v1173 = vpack.c.b16 %v1164, %v1163
    %v1174 = vpack.c.b16 %v1166, %v1165
    %v1175 = vpack.c.b16 %v1167, %v1167
    %vm1183 = vcmask 982016
    %v1185 = vsel %vm1183, %v1115, 0
    %v1188 = vsel %vm835, %v1175, 0
    %1190 = vmatprep.subr.bf16.mxu0 0
    %1191 = vmatpush1.bf16.msra.mxu0 %v1168
    %1192 = vmatprep.subr.bf16.mxu0 0
    %1193 = vmatpush1.bf16.msra.mxu0 %v1169
    %1194 = vmatprep.subr.bf16.mxu0 0
    %1195 = vmatpush1.bf16.msra.mxu0 %v1170
    %1196 = vmatprep.subr.bf16.mxu0 0
    %1197 = vmatpush1.bf16.msra.mxu0 %v1171
    %1198 = vmatprep.subr.bf16.mxu0 0
    %1199 = vmatpush1.bf16.msra.mxu0 %v1172
    %1200 = vmatprep.subr.bf16.mxu0 0
    %1201 = vmatpush1.bf16.msra.mxu0 %v1173
    %1202 = vmatprep.subr.bf16.mxu0 0
    %1203 = vmatpush1.bf16.msra.mxu0 %v1174
    %1204 = vmatprep.subr.bf16.mxu0 0
    %1205 = vmatpush1.bf16.msra.mxu0 %v1188
    %1206 = vmatprep.subr.bf16.mxu0 0
    %1207 = vmatpush1.bf16.msra.mxu0 0
    %1208 = vmatprep.subr.bf16.mxu0 0
    %1209 = vmatpush1.bf16.msra.mxu0 0
    %1210 = vmatprep.subr.bf16.mxu0 0
    %1211 = vmatpush1.bf16.msra.mxu0 0
    %1212 = vmatprep.subr.bf16.mxu0 0
    %1213 = vmatpush1.bf16.msra.mxu0 0
    %1214 = vmatprep.subr.bf16.mxu0 0
    %1215 = vmatpush1.bf16.msra.mxu0 0
    %1216 = vmatprep.subr.bf16.mxu0 0
    %1217 = vmatpush1.bf16.msra.mxu0 0
    %1218 = vmatprep.subr.bf16.mxu0 0
    %1219 = vmatpush1.bf16.msra.mxu0 0
    %1220 = vmatprep.subr.bf16.mxu0 0
    %1221 = vmatpush1.bf16.msra.mxu0 0
    %1222 = vmatprep.mubr.bf16.mxu0 0
    %1223 = vmatmul.mubr.bf16.gmra.mrb[0].mxu0 %v1185
    %v1224 = vpop.f32.mrb[0].mxu0
    %v1225 = vadd.f32 %v1136, %v1224
    %v1226 = vpop.f32.mrb[0].mxu0
    %v1227 = vpop.f32.mrb[0].mxu0
    %v1228 = vpop.f32.mrb[0].mxu0
    %1229 = vdwg.mxu0
    %v1230 = vmax.f32 %v1225, 0.0
    %v1231 = vpack.c.bf16 %v1230, %v1230
    %v1232 = vld [vmem:[%s9] sm:$0xf]
    %v1233 = vld [vmem:[%s9 + $0x4] sm:$0xf]
    %v1234 = vld [vmem:[%s9 + $0x8] sm:$0xf]
    %v1235 = vld [vmem:[%s9 + $0xc] sm:$0xf]
    %v1236 = vld [vmem:[%s9 + $0x10] sm:$0xf]
    %v1237 = vld [vmem:[%s9 + $0x14] sm:$0xf]
    %v1238 = vld [vmem:[%s9 + $0x18] sm:$0xf]
    %v1239 = vld [vmem:[%s9 + $0x1c] sm:$0x3]
    %v1240 = vld [vmem:[#allocation12] sm:$0x1]
    %v1242 = vlaneseq
    %v1243 = vshrl.u32 %v1242, 7
    %v1244 = vsub.s32 0, %v1243
    %v1245 = vrot.slane %v1240, %v1244
    %v1255 = vunpack.c.l.b16 %v1232
    %v1256 = vunpack.c.l.b16 %v1233
    %v1257 = vunpack.c.l.b16 %v1234
    %v1258 = vunpack.c.l.b16 %v1235
    %v1259 = vunpack.c.l.b16 %v1236
    %v1260 = vunpack.c.l.b16 %v1237
    %v1261 = vunpack.c.l.b16 %v1238
    %v1262 = vunpack.c.l.b16 %v1239
    %v1263 = vpack.c.b16 %v1256, %v1255
    %v1264 = vpack.c.b16 %v1258, %v1257
    %v1265 = vpack.c.b16 %v1260, %v1259
    %v1266 = vpack.c.b16 %v1262, %v1261
    %vm1270 = vcmask 490496
    %v1272 = vsel %vm1270, %v1231, 0
    %v1275 = vsel %vm381, %v1266, 0
    %1277 = vmatprep.subr.bf16.mxu0 0
    %1278 = vmatpush1.bf16.msra.mxu0 %v1263
    %1279 = vmatprep.subr.bf16.mxu0 0
    %1280 = vmatpush1.bf16.msra.mxu0 %v1264
    %1281 = vmatprep.subr.bf16.mxu0 0
    %1282 = vmatpush1.bf16.msra.mxu0 %v1265
    %1283 = vmatprep.subr.bf16.mxu0 0
    %1284 = vmatpush1.bf16.msra.mxu0 %v1275
    %1285 = vmatprep.subr.bf16.mxu0 0
    %1286 = vmatpush1.bf16.msra.mxu0 0
    %1287 = vmatprep.subr.bf16.mxu0 0
    %1288 = vmatpush1.bf16.msra.mxu0 0
    %1289 = vmatprep.subr.bf16.mxu0 0
    %1290 = vmatpush1.bf16.msra.mxu0 0
    %1291 = vmatprep.subr.bf16.mxu0 0
    %1292 = vmatpush1.bf16.msra.mxu0 0
    %1293 = vmatprep.subr.bf16.mxu0 0
    %1294 = vmatpush1.bf16.msra.mxu0 0
    %1295 = vmatprep.subr.bf16.mxu0 0
    %1296 = vmatpush1.bf16.msra.mxu0 0
    %1297 = vmatprep.subr.bf16.mxu0 0
    %1298 = vmatpush1.bf16.msra.mxu0 0
    %1299 = vmatprep.subr.bf16.mxu0 0
    %1300 = vmatpush1.bf16.msra.mxu0 0
    %1301 = vmatprep.subr.bf16.mxu0 0
    %1302 = vmatpush1.bf16.msra.mxu0 0
    %1303 = vmatprep.subr.bf16.mxu0 0
    %1304 = vmatpush1.bf16.msra.mxu0 0
    %1305 = vmatprep.subr.bf16.mxu0 0
    %1306 = vmatpush1.bf16.msra.mxu0 0
    %1307 = vmatprep.subr.bf16.mxu0 0
    %1308 = vmatpush1.bf16.msra.mxu0 0
    %1309 = vmatprep.mubr.bf16.mxu0 0
    %1310 = vmatmul.mubr.bf16.gmra.mrb[0].mxu0 %v1272
    %v1311 = vpop.f32.mrb[0].mxu0
    %v1312 = vadd.f32 %v1245, %v1311
    %v1313 = vpop.f32.mrb[0].mxu0
    %v1314 = vpop.f32.mrb[0].mxu0
    %v1315 = vpop.f32.mrb[0].mxu0
    %1316 = vdwg.mxu0
    %vm1317 = vcmask 74752
    %1318 = vst.msk [vmem:[#allocation14] sm:$0x3] %vm1317, %v1312
    // Predicated region
    $region62: #{fused_forward.1} parent=1 // pred_check
      _
    $region63: #{fused_forward.1} parent=1 // pred_check_branch
      %1320 = sbr.rel (0) target = $region65
    $region64: #{fused_forward.1} parent=1 // pred_region
      %s1322 = ssub.s32 32, 32
      %1323 = vsyncadd [#allocation8], %s1322
      %s1325 = sshll.u32 [#allocation14], 4
      %s1326 = int_to_ptr.vmem [resolvable:$true] %s1325
      %1328 = dma.vmem_to_hbm [thread:$0]  %s1326, 32, %s11, [#allocation8]
    $region65: #{fused_forward.1} parent=1 // pred_fallthru
      _
    // Predicated region
    $region66: #{fused_forward.1} parent=1 // pred_check
      _
    $region67: #{fused_forward.1} parent=1 // pred_check_branch
      %1330 = sbr.rel (0) target = $region69
    $region68: #{fused_forward.1} parent=1 // pred_region
      %1331 = dma.done [#allocation8], 32
    $region69: #{fused_forward.1} parent=1 // pred_fallthru
      _
    %1332 = vsyncpa [#allocation7], 1
    %1333 = vsyncpa [#allocation10], 1
    %1334 = vsyncpa [#allocation13], 1
    %1335 = vsyncpa [#allocation8], 1

</llo_original>
